<compile_context>
chip_gen: v5e
topology: v5e:2x2
jax: 0.10.0
libtpu: 0.0.40
codegen_flags: <defaults>
</compile_context>

<pallas_src>
import functools

import jax
import jax.numpy as jnp
from jax.experimental import pallas as pl
from jax.experimental.pallas import tpu as pltpu

NEG_SLOPE = 0.01  # nn.LeakyReLU default negative_slope


def _leaky_relu(x):
    # For 0 < slope < 1, max(x, slope*x) == leaky_relu(x); cheaper epilogue.
    return jnp.maximum(x, NEG_SLOPE * x)


def _round_up(x, m):
    return (x + m - 1) // m * m


def _cdiv(a, b):
    return -(-a // b)


def _choose_batch_tile(B, max_tb=1024):
    """Sublane-aligned batch tile; >=2 grid steps when B >= 16 (v7x megacore),
    tiles capped at max_tb, and chosen to minimize batch padding."""
    B8 = _round_up(B, 8)
    if B < 16:
        return B8
    n_tiles = max(2, _cdiv(B8, max_tb))
    return _round_up(_cdiv(B8, n_tiles), 8)


def mlp_kernel(x_ref, w1_ref, b1_ref, w2_ref, b2_ref, w3_ref, b3_ref, o_ref):
    """One batch tile: (TB, F) -> (TB, C_pad). x/weights already compute dtype."""
    cdt = w1_ref.dtype  # MXU operand dtype (bf16 by default, f32 optional)

    # fc1 + LeakyReLU (f32 accumulate, f32 epilogue)
    h = jnp.dot(x_ref[...], w1_ref[...], preferred_element_type=jnp.float32)
    h = _leaky_relu(h + b1_ref[...])

    # fc2 + LeakyReLU
    h = jnp.dot(h.astype(cdt), w2_ref[...], preferred_element_type=jnp.float32)
    h = _leaky_relu(h + b2_ref[...])

    # Dropout(p=0.3): identity in eval/inference mode.

    # fc3 (lane-dense 128-wide unmasked store; wrapper slices 6 real classes)
    o_ref[...] = (jnp.dot(h.astype(cdt), w3_ref[...],
                          preferred_element_type=jnp.float32)
                  + b3_ref[...])


def _pad2(a, rows, cols):
    return jnp.pad(a, ((0, rows - a.shape[0]), (0, cols - a.shape[1])))


def prepare_params(params, compute_dtype=jnp.bfloat16):
    """One-time prep: pad hidden/class dims to lane multiples and cast weights.

    Done once (at load time), NOT per forward call. Zero-padding is exact:
    padded columns/rows contribute 0 through LeakyReLU and the next matmul.
    Biases stay f32 (the epilogue is f32 on all chip generations).
    """
    w1, b1 = params["w1"], params["b1"]
    w2, b2 = params["w2"], params["b2"]
    w3, b3 = params["w3"], params["b3"]
    F, H = w1.shape
    C = w3.shape[1]
    H_pad = _round_up(H, 128)  # 300 -> 384
    C_pad = _round_up(C, 128)  # 6   -> 128
    return {
        "w1": _pad2(w1, F, H_pad).astype(compute_dtype),      # x keeps true F
        "b1": _pad2(b1, 1, H_pad).astype(jnp.float32),
        "w2": _pad2(w2, H_pad, H_pad).astype(compute_dtype),
        "b2": _pad2(b2, 1, H_pad).astype(jnp.float32),
        "w3": _pad2(w3, H_pad, C_pad).astype(compute_dtype),
        "b3": _pad2(b3, 1, C_pad).astype(jnp.float32),
    }


@functools.partial(jax.jit, static_argnames=("num_classes",))
def improved_nn_forward(x, prepped, *, num_classes):
    """x: (B, input_size) f32. prepped: output of prepare_params()."""
    w1, b1 = prepped["w1"], prepped["b1"]
    w2, b2 = prepped["w2"], prepped["b2"]
    w3, b3 = prepped["w3"], prepped["b3"]

    B, F = x.shape
    H_pad = w1.shape[1]
    C_pad = w3.shape[1]

    TB = _choose_batch_tile(B)
    B_pad = _round_up(B, TB)
    grid = (B_pad // TB,)

    # Pad only batch rows; cast x to the compute dtype in the wrapper so the
    # x tile DMA is already narrow (bf16) and the kernel does no load-cast.
    x_p = jnp.pad(x, ((0, B_pad - B), (0, 0))).astype(w1.dtype)

    w_bytes = jnp.dtype(w1.dtype).itemsize
    cost = pl.CostEstimate(
        flops=2 * B_pad * (F * H_pad + H_pad * H_pad + H_pad * C_pad),
        transcendentals=0,
        bytes_accessed=(B_pad * F * w_bytes                      # x (true width)
                        + B_pad * C_pad * 4                      # out (f32)
                        + (F * H_pad + H_pad * H_pad + H_pad * C_pad) * w_bytes
                        + (2 * H_pad + C_pad) * 4),              # biases (f32)
    )

    out_p = pl.pallas_call(
        mlp_kernel,
        out_shape=jax.ShapeDtypeStruct((B_pad, C_pad), jnp.float32),
        grid=grid,
        in_specs=[
            pl.BlockSpec((TB, F), lambda i: (i, 0)),        # x: per-tile, true F
            pl.BlockSpec((F, H_pad), lambda i: (0, 0)),     # w1: VMEM-resident
            pl.BlockSpec((1, H_pad), lambda i: (0, 0)),     # b1
            pl.BlockSpec((H_pad, H_pad), lambda i: (0, 0)), # w2
            pl.BlockSpec((1, H_pad), lambda i: (0, 0)),     # b2
            pl.BlockSpec((H_pad, C_pad), lambda i: (0, 0)), # w3
            pl.BlockSpec((1, C_pad), lambda i: (0, 0)),     # b3
        ],
        out_specs=pl.BlockSpec((TB, C_pad), lambda i: (i, 0)),
        compiler_params=pltpu.CompilerParams(
            dimension_semantics=("parallel",),              # batch across v7x TCs
        ),
        cost_estimate=cost,
    )(x_p, w1, b1, w2, b2, w3, b3)

    # Slice the real batch rows and the real classes back out.
    return out_p[:B, :num_classes]


def init_params(key, input_size, hidden_size, num_classes):
    """Deterministic synthetic init (shapes match the PyTorch module)."""
    ks = jax.random.split(key, 6)

    def linear(kw, kb, fan_in, fan_out):
        bound = 1.0 / jnp.sqrt(fan_in)
        w = jax.random.uniform(kw, (fan_in, fan_out), jnp.float32, -bound, bound)
        b = jax.random.uniform(kb, (1, fan_out), jnp.float32, -bound, bound)
        return w, b

    w1, b1 = linear(ks[0], ks[1], input_size, hidden_size)
    w2, b2 = linear(ks[2], ks[3], hidden_size, hidden_size)
    w3, b3 = linear(ks[4], ks[5], hidden_size, num_classes)
    return {"w1": w1, "b1": b1, "w2": w2, "b2": b2, "w3": w3, "b3": b3}


def _reference(x, params):
    h = x @ params["w1"] + params["b1"]
    h = jnp.where(h > 0, h, NEG_SLOPE * h)
    h = h @ params["w2"] + params["b2"]
    h = jnp.where(h > 0, h, NEG_SLOPE * h)
    return h @ params["w3"] + params["b3"]


if __name__ == "__main__":
    # Wine-quality-red: 11 features, 6 distinct quality classes; hidden_size=300.
    batch = 8
    input_size = 11
    hidden_size = 300
    num_classes = 6

    key = jax.random.PRNGKey(0)
    kx, kp = jax.random.split(key)
    x = jax.random.normal(kx, (batch, input_size), dtype=jnp.float32)
    params = init_params(kp, input_size, hidden_size, num_classes)

    ref = _reference(x, params)

    # f32 operand path (exact vs. reference).
    prepped_f32 = prepare_params(params, compute_dtype=jnp.float32)
    out_f32 = improved_nn_forward(x, prepped_f32, num_classes=num_classes)
    jax.block_until_ready(out_f32)
    assert out_f32.shape == (batch, num_classes)
    assert jnp.allclose(out_f32, ref, atol=1e-4, rtol=1e-4)

    # Default bf16 path (v6e/v7x MXU throughput, half the weight DMA).
    prepped_bf16 = prepare_params(params)  # compute_dtype=bf16 default
    out_bf16 = improved_nn_forward(x, prepped_bf16, num_classes=num_classes)
    jax.block_until_ready(out_bf16)
    assert out_bf16.shape == (batch, num_classes)
    assert jnp.allclose(out_bf16, ref, atol=5e-2, rtol=5e-2)

    print("KERNEL_OK")
</pallas_src>

<mosaic_0001>
module attributes {stable_mosaic.version = 11 : i64} {
  func.func @mlp_kernel(%arg0: i32, %arg1: memref<8x11xf32, #tpu.memory_space<vmem>>, %arg2: memref<11x384xf32, #tpu.memory_space<vmem>>, %arg3: memref<1x384xf32, #tpu.memory_space<vmem>>, %arg4: memref<384x384xf32, #tpu.memory_space<vmem>>, %arg5: memref<1x384xf32, #tpu.memory_space<vmem>>, %arg6: memref<384x128xf32, #tpu.memory_space<vmem>>, %arg7: memref<1x128xf32, #tpu.memory_space<vmem>>, %arg8: memref<8x128xf32, #tpu.memory_space<vmem>>) attributes {dimension_semantics = [#tpu.dimension_semantics<parallel>], iteration_bounds = array<i64: 1>, scalar_prefetch = 0 : i64, scratch_operands = 0 : i64, tpu.core_type = #tpu.core_type<tc>, window_params = [{transform_indices = @transform_0, window_bounds = array<i64: 8, 11>}, {pipeline_mode = #tpu.pipeline_mode<synchronous>, transform_indices = @transform_1, window_bounds = array<i64: 11, 384>}, {pipeline_mode = #tpu.pipeline_mode<synchronous>, transform_indices = @transform_2, window_bounds = array<i64: 1, 384>}, {pipeline_mode = #tpu.pipeline_mode<synchronous>, transform_indices = @transform_3, window_bounds = array<i64: 384, 384>}, {pipeline_mode = #tpu.pipeline_mode<synchronous>, transform_indices = @transform_4, window_bounds = array<i64: 1, 384>}, {pipeline_mode = #tpu.pipeline_mode<synchronous>, transform_indices = @transform_5, window_bounds = array<i64: 384, 128>}, {pipeline_mode = #tpu.pipeline_mode<synchronous>, transform_indices = @transform_6, window_bounds = array<i64: 1, 128>}, {transform_indices = @transform_7, window_bounds = array<i64: 8, 128>}]} {
    %c0 = arith.constant 0 : index
    %c0_0 = arith.constant 0 : index
    %0 = vector.load %arg1[%c0, %c0_0] : memref<8x11xf32, #tpu.memory_space<vmem>>, vector<8x11xf32>
    %c0_1 = arith.constant 0 : index
    %c0_2 = arith.constant 0 : index
    %1 = vector.load %arg2[%c0_1, %c0_2] : memref<11x384xf32, #tpu.memory_space<vmem>>, vector<11x384xf32>
    %cst = arith.constant dense<0.000000e+00> : vector<8x384xf32>
    %2 = tpu.matmul %0, %1, %cst {dimension_numbers = #tpu.dot_dimension_numbers<[1], [0], [0], [1], [0, 0, 1, 1], [], []>} : vector<8x11xf32>, vector<11x384xf32>, vector<8x384xf32> -> vector<8x384xf32>
    %c0_3 = arith.constant 0 : index
    %c0_4 = arith.constant 0 : index
    %3 = vector.load %arg3[%c0_3, %c0_4] : memref<1x384xf32, #tpu.memory_space<vmem>>, vector<1x384xf32>
    %4 = vector.broadcast %3 : vector<1x384xf32> to vector<8x384xf32>
    %5 = arith.addf %2, %4 : vector<8x384xf32>
    %cst_5 = arith.constant 0.00999999977 : f32
    %6 = vector.broadcast %cst_5 : f32 to vector<8x384xf32>
    %7 = arith.mulf %6, %5 : vector<8x384xf32>
    %8 = arith.maximumf %5, %7 : vector<8x384xf32>
    %c0_6 = arith.constant 0 : index
    %c0_7 = arith.constant 0 : index
    %9 = vector.load %arg4[%c0_6, %c0_7] : memref<384x384xf32, #tpu.memory_space<vmem>>, vector<384x384xf32>
    %cst_8 = arith.constant dense<0.000000e+00> : vector<8x384xf32>
    %10 = tpu.matmul %8, %9, %cst_8 {dimension_numbers = #tpu.dot_dimension_numbers<[1], [0], [0], [1], [0, 0, 1, 1], [], []>} : vector<8x384xf32>, vector<384x384xf32>, vector<8x384xf32> -> vector<8x384xf32>
    %c0_9 = arith.constant 0 : index
    %c0_10 = arith.constant 0 : index
    %11 = vector.load %arg5[%c0_9, %c0_10] : memref<1x384xf32, #tpu.memory_space<vmem>>, vector<1x384xf32>
    %12 = vector.broadcast %11 : vector<1x384xf32> to vector<8x384xf32>
    %13 = arith.addf %10, %12 : vector<8x384xf32>
    %cst_11 = arith.constant 0.00999999977 : f32
    %14 = vector.broadcast %cst_11 : f32 to vector<8x384xf32>
    %15 = arith.mulf %14, %13 : vector<8x384xf32>
    %16 = arith.maximumf %13, %15 : vector<8x384xf32>
    %c0_12 = arith.constant 0 : index
    %c0_13 = arith.constant 0 : index
    %17 = vector.load %arg6[%c0_12, %c0_13] : memref<384x128xf32, #tpu.memory_space<vmem>>, vector<384x128xf32>
    %cst_14 = arith.constant dense<0.000000e+00> : vector<8x128xf32>
    %18 = tpu.matmul %16, %17, %cst_14 {dimension_numbers = #tpu.dot_dimension_numbers<[1], [0], [0], [1], [0, 0, 1, 1], [], []>} : vector<8x384xf32>, vector<384x128xf32>, vector<8x128xf32> -> vector<8x128xf32>
    %c0_15 = arith.constant 0 : index
    %c0_16 = arith.constant 0 : index
    %19 = vector.load %arg7[%c0_15, %c0_16] : memref<1x128xf32, #tpu.memory_space<vmem>>, vector<1x128xf32>
    %20 = vector.broadcast %19 : vector<1x128xf32> to vector<8x128xf32>
    %21 = arith.addf %18, %20 : vector<8x128xf32>
    %c0_17 = arith.constant 0 : index
    %c0_18 = arith.constant 0 : index
    %22 = vector.load %arg8[%c0_17, %c0_18] : memref<8x128xf32, #tpu.memory_space<vmem>>, vector<8x128xf32>
    tpu.vector_store %arg8[%c0_17, %c0_18], %21 {strides = array<i32>} : memref<8x128xf32, #tpu.memory_space<vmem>>, vector<8x128xf32>,
    return
  }
  func.func @transform_0(%arg0: i32) -> (i32, i32) {
    %c0_i32 = arith.constant 0 : i32
    %c0_i32_0 = arith.constant 0 : i32
    return %arg0, %c0_i32 : i32, i32
  }
  func.func @transform_1(%arg0: i32) -> (i32, i32) {
    %c0_i32 = arith.constant 0 : i32
    %c0_i32_0 = arith.constant 0 : i32
    %c0_i32_1 = arith.constant 0 : i32
    return %c0_i32, %c0_i32_0 : i32, i32
  }
  func.func @transform_2(%arg0: i32) -> (i32, i32) {
    %c0_i32 = arith.constant 0 : i32
    %c0_i32_0 = arith.constant 0 : i32
    %c0_i32_1 = arith.constant 0 : i32
    return %c0_i32, %c0_i32_0 : i32, i32
  }
  func.func @transform_3(%arg0: i32) -> (i32, i32) {
    %c0_i32 = arith.constant 0 : i32
    %c0_i32_0 = arith.constant 0 : i32
    %c0_i32_1 = arith.constant 0 : i32
    return %c0_i32, %c0_i32_0 : i32, i32
  }
  func.func @transform_4(%arg0: i32) -> (i32, i32) {
    %c0_i32 = arith.constant 0 : i32
    %c0_i32_0 = arith.constant 0 : i32
    %c0_i32_1 = arith.constant 0 : i32
    return %c0_i32, %c0_i32_0 : i32, i32
  }
  func.func @transform_5(%arg0: i32) -> (i32, i32) {
    %c0_i32 = arith.constant 0 : i32
    %c0_i32_0 = arith.constant 0 : i32
    %c0_i32_1 = arith.constant 0 : i32
    return %c0_i32, %c0_i32_0 : i32, i32
  }
  func.func @transform_6(%arg0: i32) -> (i32, i32) {
    %c0_i32 = arith.constant 0 : i32
    %c0_i32_0 = arith.constant 0 : i32
    %c0_i32_1 = arith.constant 0 : i32
    return %c0_i32, %c0_i32_0 : i32, i32
  }
  func.func @transform_7(%arg0: i32) -> (i32, i32) {
    %c0_i32 = arith.constant 0 : i32
    %c0_i32_0 = arith.constant 0 : i32
    return %arg0, %c0_i32 : i32, i32
  }
}

</mosaic_0001>

<llo_original>
// kernel: improved_nn_forward.1
$region0: #{improved_nn_forward.1}
  #allocation0 [shape = 'u32[]', space=smem, size = 0x4, offset = 0x4, fixed_abs, tag = 'smem constant byte address 0x4 - core index']
  #allocation1 [shape = 'u32[72,128]{1,0:T(1,128)}', space=vmem, size = 0x9000, scoped, tag = 'internal scratch']
  %s0 = inlined_call_operand.hbm [shape: f32[8,11], index: 0, kind: input, shape index: {}]
  %s1 = inlined_call_operand.hbm [shape: f32[11,384], index: 1, kind: input, shape index: {}]
  %s2 = inlined_call_operand.hbm [shape: f32[1,384], index: 2, kind: input, shape index: {}]
  %s3 = inlined_call_operand.hbm [shape: f32[384,384], index: 3, kind: input, shape index: {}]
  %s4 = inlined_call_operand.hbm [shape: f32[1,384], index: 4, kind: input, shape index: {}]
  %s5 = inlined_call_operand.hbm [shape: f32[384,128], index: 5, kind: input, shape index: {}]
  %s6 = inlined_call_operand.vmem [shape: f32[1,128], index: 6, kind: input, shape index: {}]
  %s7 = inlined_call_operand.hbm [shape: f32[8,128], index: 7, kind: output, shape index: {}]
  %s8 = sld [smem:[#allocation0]]
  $region62: #{improved_nn_forward.1} parent=0
    _
  %s10 = ssub.s32 1, %s8
  %s11 = scalar_select 0, %s10, %s8
  $region1: #{improved_nn_forward.1} parent=0
    #allocation2 [shape = 'u8[4096]{0}', space=vmem, size = 0x1000, scoped, tag = 'input window, operand 0, single buffered']
    #allocation3 [shape = 's32[1]{0}', space=sflag, size = 0x4, scoped, tag = 'scoped memory for improved_nn_forward.1']
    #allocation4 [shape = 's32[1]{0}', space=sflag, size = 0x4, scoped, tag = 'scoped memory for improved_nn_forward.1']
    #allocation5 [shape = 'u8[24576]{0}', space=vmem, size = 0x6000, scoped, tag = 'input window, operand 1, single buffered']
    #allocation6 [shape = 's32[1]{0}', space=sflag, size = 0x4, scoped, tag = 'scoped memory for improved_nn_forward.1']
    #allocation7 [shape = 'u8[1536]{0}', space=vmem, size = 0x800, scoped, tag = 'input window, operand 2, single buffered']
    #allocation8 [shape = 'u8[589824]{0}', space=vmem, size = 0x90000, scoped, tag = 'input window, operand 3, single buffered']
    #allocation9 [shape = 's32[1]{0}', space=sflag, size = 0x4, scoped, tag = 'scoped memory for improved_nn_forward.1']
    #allocation10 [shape = 'u8[1536]{0}', space=vmem, size = 0x800, scoped, tag = 'input window, operand 4, single buffered']
    #allocation11 [shape = 'u8[196608]{0}', space=vmem, size = 0x30000, scoped, tag = 'input window, operand 5, single buffered']
    #allocation12 [shape = 's32[1]{0}', space=sflag, size = 0x4, scoped, tag = 'scoped memory for improved_nn_forward.1']
    #allocation13 [shape = 'u8[4096]{0}', space=vmem, size = 0x1000, scoped, tag = 'output window, operand 0, single buffered']
    %12 = vsyncpa [#allocation3], 0
    %13 = vsyncpa [#allocation6], 0
    %14 = vsyncpa [#allocation9], 0
    %15 = vsyncpa [#allocation12], 0
    %16 = vsyncpa [#allocation4], 0
    // Predicated region
    $region2: #{improved_nn_forward.1} parent=1 // pred_check
      _
    $region3: #{improved_nn_forward.1} parent=1 // pred_check_branch
      %18 = sbr.rel (0) target = $region5
    $region4: #{improved_nn_forward.1} parent=1 // pred_region
      %20 = vsyncadd [#allocation3], 0
      %s22 = sshll.u32 %s0, 4
      %s23 = int_to_ptr.hbm [resolvable:$true] %s22
      %s24 = sshll.u32 [#allocation2], 4
      %s25 = int_to_ptr.vmem [resolvable:$true] %s24
      %27 = dma.hbm_to_vmem [thread:$0]  %s23, 128, %s25, [#allocation3]
    $region5: #{improved_nn_forward.1} parent=1 // pred_fallthru
      _
    // Predicated region
    $region6: #{improved_nn_forward.1} parent=1 // pred_check
      _
    $region7: #{improved_nn_forward.1} parent=1 // pred_check_branch
      %29 = sbr.rel (0) target = $region9
    $region8: #{improved_nn_forward.1} parent=1 // pred_region
      %31 = vsyncadd [#allocation6], 0
      %s32 = sshll.u32 %s1, 4
      %s33 = int_to_ptr.hbm [resolvable:$true] %s32
      %s34 = sshll.u32 [#allocation5], 4
      %s35 = int_to_ptr.vmem [resolvable:$true] %s34
      %40 = dma.hbm_to_vmem [thread:$0]  %s33, 768, %s35, [#allocation6], 384, 384, 24
    $region9: #{improved_nn_forward.1} parent=1 // pred_fallthru
      _
    // Predicated region
    $region10: #{improved_nn_forward.1} parent=1 // pred_check
      _
    $region11: #{improved_nn_forward.1} parent=1 // pred_check_branch
      %42 = sbr.rel (0) target = $region13
    $region12: #{improved_nn_forward.1} parent=1 // pred_region
      %44 = vsyncadd [#allocation6], 0
      %s46 = sshll.u32 %s2, 4
      %s47 = int_to_ptr.hbm [resolvable:$true] %s46
      %s48 = sshll.u32 [#allocation7], 4
      %s49 = int_to_ptr.vmem [resolvable:$true] %s48
      %51 = dma.hbm_to_vmem [thread:$0]  %s47, 48, %s49, [#allocation6]
    $region13: #{improved_nn_forward.1} parent=1 // pred_fallthru
      _
    // Predicated region
    $region14: #{improved_nn_forward.1} parent=1 // pred_check
      _
    $region15: #{improved_nn_forward.1} parent=1 // pred_check_branch
      %53 = sbr.rel (0) target = $region17
    $region16: #{improved_nn_forward.1} parent=1 // pred_region
      %55 = vsyncadd [#allocation9], 0
      %s56 = sshll.u32 %s3, 4
      %s57 = int_to_ptr.hbm [resolvable:$true] %s56
      %s58 = sshll.u32 [#allocation8], 4
      %s59 = int_to_ptr.vmem [resolvable:$true] %s58
      %64 = dma.hbm_to_vmem [thread:$0]  %s57, 18432, %s59, [#allocation9], 384, 384, 24
    $region17: #{improved_nn_forward.1} parent=1 // pred_fallthru
      _
    // Predicated region
    $region18: #{improved_nn_forward.1} parent=1 // pred_check
      _
    $region19: #{improved_nn_forward.1} parent=1 // pred_check_branch
      %66 = sbr.rel (0) target = $region21
    $region20: #{improved_nn_forward.1} parent=1 // pred_region
      %68 = vsyncadd [#allocation9], 0
      %s70 = sshll.u32 %s4, 4
      %s71 = int_to_ptr.hbm [resolvable:$true] %s70
      %s72 = sshll.u32 [#allocation10], 4
      %s73 = int_to_ptr.vmem [resolvable:$true] %s72
      %75 = dma.hbm_to_vmem [thread:$0]  %s71, 48, %s73, [#allocation9]
    $region21: #{improved_nn_forward.1} parent=1 // pred_fallthru
      _
    // Predicated region
    $region22: #{improved_nn_forward.1} parent=1 // pred_check
      _
    $region23: #{improved_nn_forward.1} parent=1 // pred_check_branch
      %77 = sbr.rel (0) target = $region25
    $region24: #{improved_nn_forward.1} parent=1 // pred_region
      %79 = vsyncadd [#allocation12], 0
      %s80 = sshll.u32 %s5, 4
      %s81 = int_to_ptr.hbm [resolvable:$true] %s80
      %s82 = sshll.u32 [#allocation11], 4
      %s83 = int_to_ptr.vmem [resolvable:$true] %s82
      %88 = dma.hbm_to_vmem [thread:$0]  %s81, 6144, %s83, [#allocation12], 128, 128, 8
    $region25: #{improved_nn_forward.1} parent=1 // pred_fallthru
      _
    // Predicated region
    $region26: #{improved_nn_forward.1} parent=1 // pred_check
      _
    $region27: #{improved_nn_forward.1} parent=1 // pred_check_branch
      %90 = sbr.rel (0) target = $region29
    $region28: #{improved_nn_forward.1} parent=1 // pred_region
      _
    $region29: #{improved_nn_forward.1} parent=1 // pred_fallthru
      _
    // Predicated region
    $region30: #{improved_nn_forward.1} parent=1 // pred_check
      _
    $region31: #{improved_nn_forward.1} parent=1 // pred_check_branch
      %92 = sbr.rel (0) target = $region33
    $region32: #{improved_nn_forward.1} parent=1 // pred_region
      %94 = dma.done [#allocation3], 128
    $region33: #{improved_nn_forward.1} parent=1 // pred_fallthru
      _
    // Predicated region
    $region34: #{improved_nn_forward.1} parent=1 // pred_check
      _
    $region35: #{improved_nn_forward.1} parent=1 // pred_check_branch
      %96 = sbr.rel (0) target = $region37
    $region36: #{improved_nn_forward.1} parent=1 // pred_region
      %98 = dma.done [#allocation6], 768
    $region37: #{improved_nn_forward.1} parent=1 // pred_fallthru
      _
    // Predicated region
    $region38: #{improved_nn_forward.1} parent=1 // pred_check
      _
    $region39: #{improved_nn_forward.1} parent=1 // pred_check_branch
      %100 = sbr.rel (0) target = $region41
    $region40: #{improved_nn_forward.1} parent=1 // pred_region
      %102 = dma.done [#allocation6], 48
    $region41: #{improved_nn_forward.1} parent=1 // pred_fallthru
      _
    // Predicated region
    $region42: #{improved_nn_forward.1} parent=1 // pred_check
      _
    $region43: #{improved_nn_forward.1} parent=1 // pred_check_branch
      %104 = sbr.rel (0) target = $region45
    $region44: #{improved_nn_forward.1} parent=1 // pred_region
      %106 = dma.done [#allocation9], 18432
    $region45: #{improved_nn_forward.1} parent=1 // pred_fallthru
      _
    // Predicated region
    $region46: #{improved_nn_forward.1} parent=1 // pred_check
      _
    $region47: #{improved_nn_forward.1} parent=1 // pred_check_branch
      %108 = sbr.rel (0) target = $region49
    $region48: #{improved_nn_forward.1} parent=1 // pred_region
      %110 = dma.done [#allocation9], 48
    $region49: #{improved_nn_forward.1} parent=1 // pred_fallthru
      _
    // Predicated region
    $region50: #{improved_nn_forward.1} parent=1 // pred_check
      _
    $region51: #{improved_nn_forward.1} parent=1 // pred_check_branch
      %112 = sbr.rel (0) target = $region53
    $region52: #{improved_nn_forward.1} parent=1 // pred_region
      %114 = dma.done [#allocation12], 6144
    $region53: #{improved_nn_forward.1} parent=1 // pred_fallthru
      _
    %v115 = vld [vmem:[#allocation2] sm:$0xff]
    %v116 = vld [vmem:[#allocation5] sm:$0xff]
    %v117 = vld [vmem:[#allocation5 + $0x8] sm:$0xff]
    %v118 = vld [vmem:[#allocation5 + $0x10] sm:$0xff]
    %v119 = vld [vmem:[#allocation5 + $0x18] sm:$0x7]
    %v120 = vld [vmem:[#allocation5 + $0x20] sm:$0x7]
    %v121 = vld [vmem:[#allocation5 + $0x28] sm:$0x7]
    %v122 = vld [vmem:[#allocation7] sm:$0x7]
    %v124 = vperm.slane %v122, 0
    %v125 = vperm.slane %v122, 1
    %v126 = vperm.slane %v122, 2
    %vm130 = vcmask 89088
    %v132 = vsel %vm130, %v115, 0
    %vm134 = vcmask 1042432
    %v136 = vsel %vm134, %v119, 0
    %v139 = vsel %vm134, %v120, 0
    %v142 = vsel %vm134, %v121, 0
    %144 = vmatpush.msra.mxu0 0.0
    %145 = vmatpush.msra.mxu0 0.0
    %146 = vmatpush.msra.mxu0 0.0
    %147 = vmatpush.msra.mxu0 0.0
    %148 = vmatpush.msra.mxu0 0.0
    %149 = vmatpush.msra.mxu0 0.0
    %150 = vmatpush.msra.mxu0 0.0
    %151 = vmatpush.msra.mxu0 0.0
    %152 = vmatpush.msra.mxu0 0.0
    %153 = vmatpush.msra.mxu0 0.0
    %154 = vmatpush.msra.mxu0 0.0
    %155 = vmatpush.msra.mxu0 0.0
    %156 = vmatpush.msra.mxu0 0.0
    %157 = vmatpush.msra.mxu0 0.0
    %158 = vmatpush.msra.mxu0 %v136
    %159 = vmatpush.msra.mxu0 %v116
    %160 = vmatmul.f32.gmra.mxu0 %v132
    %v161 = vpop.f32.mrf.mxu0
    %v162 = vadd.f32 %v124, %v161
    %163 = vdwg.mxu0
    %164 = vmatpush.msra.mxu0 0.0
    %165 = vmatpush.msra.mxu0 0.0
    %166 = vmatpush.msra.mxu0 0.0
    %167 = vmatpush.msra.mxu0 0.0
    %168 = vmatpush.msra.mxu0 0.0
    %169 = vmatpush.msra.mxu0 0.0
    %170 = vmatpush.msra.mxu0 0.0
    %171 = vmatpush.msra.mxu0 0.0
    %172 = vmatpush.msra.mxu0 0.0
    %173 = vmatpush.msra.mxu0 0.0
    %174 = vmatpush.msra.mxu0 0.0
    %175 = vmatpush.msra.mxu0 0.0
    %176 = vmatpush.msra.mxu0 0.0
    %177 = vmatpush.msra.mxu0 0.0
    %178 = vmatpush.msra.mxu0 %v139
    %179 = vmatpush.msra.mxu0 %v117
    %180 = vmatmul.f32.gmra.mxu0 %v132
    %v181 = vpop.f32.mrf.mxu0
    %v182 = vadd.f32 %v125, %v181
    %183 = vdwg.mxu0
    %184 = vmatpush.msra.mxu0 0.0
    %185 = vmatpush.msra.mxu0 0.0
    %186 = vmatpush.msra.mxu0 0.0
    %187 = vmatpush.msra.mxu0 0.0
    %188 = vmatpush.msra.mxu0 0.0
    %189 = vmatpush.msra.mxu0 0.0
    %190 = vmatpush.msra.mxu0 0.0
    %191 = vmatpush.msra.mxu0 0.0
    %192 = vmatpush.msra.mxu0 0.0
    %193 = vmatpush.msra.mxu0 0.0
    %194 = vmatpush.msra.mxu0 0.0
    %195 = vmatpush.msra.mxu0 0.0
    %196 = vmatpush.msra.mxu0 0.0
    %197 = vmatpush.msra.mxu0 0.0
    %198 = vmatpush.msra.mxu0 %v142
    %199 = vmatpush.msra.mxu0 %v118
    %200 = vmatmul.f32.gmra.mxu0 %v132
    %v201 = vpop.f32.mrf.mxu0
    %v202 = vadd.f32 %v126, %v201
    %203 = vdwg.mxu0
    %v204 = vmul.f32 %v162, 0.01
    %v205 = vmul.f32 %v182, 0.01
    %v206 = vmul.f32 %v202, 0.01
    %v207 = vmax.f32 %v162, %v204
    %v208 = vmax.f32 %v182, %v205
    %v209 = vmax.f32 %v202, %v206
    %v210 = vld [vmem:[#allocation8] sm:$0xff]
    %v211 = vld [vmem:[#allocation8 + $0x8] sm:$0xff]
    %v212 = vld [vmem:[#allocation8 + $0x10] sm:$0xff]
    %v213 = vld [vmem:[#allocation8 + $0x18] sm:$0xff]
    %v214 = vld [vmem:[#allocation8 + $0x20] sm:$0xff]
    %v215 = vld [vmem:[#allocation8 + $0x28] sm:$0xff]
    %v216 = vld [vmem:[#allocation8 + $0x30] sm:$0xff]
    %v217 = vld [vmem:[#allocation8 + $0x38] sm:$0xff]
    %v218 = vld [vmem:[#allocation8 + $0x40] sm:$0xff]
    %v219 = vld [vmem:[#allocation8 + $0x48] sm:$0xff]
    %v220 = vld [vmem:[#allocation8 + $0x50] sm:$0xff]
    %v221 = vld [vmem:[#allocation8 + $0x58] sm:$0xff]
    %v222 = vld [vmem:[#allocation8 + $0x60] sm:$0xff]
    %v223 = vld [vmem:[#allocation8 + $0x68] sm:$0xff]
    %v224 = vld [vmem:[#allocation8 + $0x70] sm:$0xff]
    %v225 = vld [vmem:[#allocation8 + $0x78] sm:$0xff]
    %v226 = vld [vmem:[#allocation8 + $0x80] sm:$0xff]
    %v227 = vld [vmem:[#allocation8 + $0x88] sm:$0xff]
    %v228 = vld [vmem:[#allocation8 + $0x90] sm:$0xff]
    %v229 = vld [vmem:[#allocation8 + $0x98] sm:$0xff]
    %v230 = vld [vmem:[#allocation8 + $0xa0] sm:$0xff]
    %v231 = vld [vmem:[#allocation8 + $0xa8] sm:$0xff]
    %v232 = vld [vmem:[#allocation8 + $0xb0] sm:$0xff]
    %v233 = vld [vmem:[#allocation8 + $0xb8] sm:$0xff]
    %v234 = vld [vmem:[#allocation8 + $0xc0] sm:$0xff]
    %v235 = vld [vmem:[#allocation8 + $0xc8] sm:$0xff]
    %v236 = vld [vmem:[#allocation8 + $0xd0] sm:$0xff]
    %v237 = vld [vmem:[#allocation8 + $0xd8] sm:$0xff]
    %v238 = vld [vmem:[#allocation8 + $0xe0] sm:$0xff]
    %v239 = vld [vmem:[#allocation8 + $0xe8] sm:$0xff]
    %v240 = vld [vmem:[#allocation8 + $0xf0] sm:$0xff]
    %v241 = vld [vmem:[#allocation8 + $0xf8] sm:$0xff]
    %v242 = vld [vmem:[#allocation8 + $0x100] sm:$0xff]
    %v243 = vld [vmem:[#allocation8 + $0x108] sm:$0xff]
    %v244 = vld [vmem:[#allocation8 + $0x110] sm:$0xff]
    %v245 = vld [vmem:[#allocation8 + $0x118] sm:$0xff]
    %v246 = vld [vmem:[#allocation8 + $0x120] sm:$0xff]
    %v247 = vld [vmem:[#allocation8 + $0x128] sm:$0xff]
    %v248 = vld [vmem:[#allocation8 + $0x130] sm:$0xff]
    %v249 = vld [vmem:[#allocation8 + $0x138] sm:$0xff]
    %v250 = vld [vmem:[#allocation8 + $0x140] sm:$0xff]
    %v251 = vld [vmem:[#allocation8 + $0x148] sm:$0xff]
    %v252 = vld [vmem:[#allocation8 + $0x150] sm:$0xff]
    %v253 = vld [vmem:[#allocation8 + $0x158] sm:$0xff]
    %v254 = vld [vmem:[#allocation8 + $0x160] sm:$0xff]
    %v255 = vld [vmem:[#allocation8 + $0x168] sm:$0xff]
    %v256 = vld [vmem:[#allocation8 + $0x170] sm:$0xff]
    %v257 = vld [vmem:[#allocation8 + $0x178] sm:$0xff]
    %v258 = vld [vmem:[#allocation8 + $0x180] sm:$0xff]
    %v259 = vld [vmem:[#allocation8 + $0x188] sm:$0xff]
    %v260 = vld [vmem:[#allocation8 + $0x190] sm:$0xff]
    %v261 = vld [vmem:[#allocation8 + $0x198] sm:$0xff]
    %v262 = vld [vmem:[#allocation8 + $0x1a0] sm:$0xff]
    %v263 = vld [vmem:[#allocation8 + $0x1a8] sm:$0xff]
    %v264 = vld [vmem:[#allocation8 + $0x1b0] sm:$0xff]
    %v265 = vld [vmem:[#allocation8 + $0x1b8] sm:$0xff]
    %v266 = vld [vmem:[#allocation8 + $0x1c0] sm:$0xff]
    %v267 = vld [vmem:[#allocation8 + $0x1c8] sm:$0xff]
    %v268 = vld [vmem:[#allocation8 + $0x1d0] sm:$0xff]
    %v269 = vld [vmem:[#allocation8 + $0x1d8] sm:$0xff]
    %v270 = vld [vmem:[#allocation8 + $0x1e0] sm:$0xff]
    %v271 = vld [vmem:[#allocation8 + $0x1e8] sm:$0xff]
    %v272 = vld [vmem:[#allocation8 + $0x1f0] sm:$0xff]
    %v273 = vld [vmem:[#allocation8 + $0x1f8] sm:$0xff]
    %v274 = vld [vmem:[#allocation8 + $0x200] sm:$0xff]
    %v275 = vld [vmem:[#allocation8 + $0x208] sm:$0xff]
    %v276 = vld [vmem:[#allocation8 + $0x210] sm:$0xff]
    %v277 = vld [vmem:[#allocation8 + $0x218] sm:$0xff]
    %v278 = vld [vmem:[#allocation8 + $0x220] sm:$0xff]
    %v279 = vld [vmem:[#allocation8 + $0x228] sm:$0xff]
    %v280 = vld [vmem:[#allocation8 + $0x230] sm:$0xff]
    %v281 = vld [vmem:[#allocation8 + $0x238] sm:$0xff]
    %v282 = vld [vmem:[#allocation8 + $0x240] sm:$0xff]
    %v283 = vld [vmem:[#allocation8 + $0x248] sm:$0xff]
    %v284 = vld [vmem:[#allocation8 + $0x250] sm:$0xff]
    %v285 = vld [vmem:[#allocation8 + $0x258] sm:$0xff]
    %v286 = vld [vmem:[#allocation8 + $0x260] sm:$0xff]
    %v287 = vld [vmem:[#allocation8 + $0x268] sm:$0xff]
    %v288 = vld [vmem:[#allocation8 + $0x270] sm:$0xff]
    %v289 = vld [vmem:[#allocation8 + $0x278] sm:$0xff]
    %v290 = vld [vmem:[#allocation8 + $0x280] sm:$0xff]
    %v291 = vld [vmem:[#allocation8 + $0x288] sm:$0xff]
    %v292 = vld [vmem:[#allocation8 + $0x290] sm:$0xff]
    %v293 = vld [vmem:[#allocation8 + $0x298] sm:$0xff]
    %v294 = vld [vmem:[#allocation8 + $0x2a0] sm:$0xff]
    %v295 = vld [vmem:[#allocation8 + $0x2a8] sm:$0xff]
    %v296 = vld [vmem:[#allocation8 + $0x2b0] sm:$0xff]
    %v297 = vld [vmem:[#allocation8 + $0x2b8] sm:$0xff]
    %v298 = vld [vmem:[#allocation8 + $0x2c0] sm:$0xff]
    %v299 = vld [vmem:[#allocation8 + $0x2c8] sm:$0xff]
    %v300 = vld [vmem:[#allocation8 + $0x2d0] sm:$0xff]
    %v301 = vld [vmem:[#allocation8 + $0x2d8] sm:$0xff]
    %v302 = vld [vmem:[#allocation8 + $0x2e0] sm:$0xff]
    %v303 = vld [vmem:[#allocation8 + $0x2e8] sm:$0xff]
    %v304 = vld [vmem:[#allocation8 + $0x2f0] sm:$0xff]
    %v305 = vld [vmem:[#allocation8 + $0x2f8] sm:$0xff]
    %v306 = vld [vmem:[#allocation8 + $0x300] sm:$0xff]
    %v307 = vld [vmem:[#allocation8 + $0x308] sm:$0xff]
    %v308 = vld [vmem:[#allocation8 + $0x310] sm:$0xff]
    %v309 = vld [vmem:[#allocation8 + $0x318] sm:$0xff]
    %v310 = vld [vmem:[#allocation8 + $0x320] sm:$0xff]
    %v311 = vld [vmem:[#allocation8 + $0x328] sm:$0xff]
    %v312 = vld [vmem:[#allocation8 + $0x330] sm:$0xff]
    %v313 = vld [vmem:[#allocation8 + $0x338] sm:$0xff]
    %v314 = vld [vmem:[#allocation8 + $0x340] sm:$0xff]
    %v315 = vld [vmem:[#allocation8 + $0x348] sm:$0xff]
    %v316 = vld [vmem:[#allocation8 + $0x350] sm:$0xff]
    %v317 = vld [vmem:[#allocation8 + $0x358] sm:$0xff]
    %v318 = vld [vmem:[#allocation8 + $0x360] sm:$0xff]
    %v319 = vld [vmem:[#allocation8 + $0x368] sm:$0xff]
    %v320 = vld [vmem:[#allocation8 + $0x370] sm:$0xff]
    %v321 = vld [vmem:[#allocation8 + $0x378] sm:$0xff]
    %v322 = vld [vmem:[#allocation8 + $0x380] sm:$0xff]
    %v323 = vld [vmem:[#allocation8 + $0x388] sm:$0xff]
    %v324 = vld [vmem:[#allocation8 + $0x390] sm:$0xff]
    %v325 = vld [vmem:[#allocation8 + $0x398] sm:$0xff]
    %v326 = vld [vmem:[#allocation8 + $0x3a0] sm:$0xff]
    %v327 = vld [vmem:[#allocation8 + $0x3a8] sm:$0xff]
    %v328 = vld [vmem:[#allocation8 + $0x3b0] sm:$0xff]
    %v329 = vld [vmem:[#allocation8 + $0x3b8] sm:$0xff]
    %v330 = vld [vmem:[#allocation8 + $0x3c0] sm:$0xff]
    %v331 = vld [vmem:[#allocation8 + $0x3c8] sm:$0xff]
    %v332 = vld [vmem:[#allocation8 + $0x3d0] sm:$0xff]
    %v333 = vld [vmem:[#allocation8 + $0x3d8] sm:$0xff]
    %v334 = vld [vmem:[#allocation8 + $0x3e0] sm:$0xff]
    %v335 = vld [vmem:[#allocation8 + $0x3e8] sm:$0xff]
    %v336 = vld [vmem:[#allocation8 + $0x3f0] sm:$0xff]
    %v337 = vld [vmem:[#allocation8 + $0x3f8] sm:$0xff]
    %v338 = vld [vmem:[#allocation8 + $0x400] sm:$0xff]
    %v339 = vld [vmem:[#allocation8 + $0x408] sm:$0xff]
    %v340 = vld [vmem:[#allocation8 + $0x410] sm:$0xff]
    %v341 = vld [vmem:[#allocation8 + $0x418] sm:$0xff]
    %v342 = vld [vmem:[#allocation8 + $0x420] sm:$0xff]
    %v343 = vld [vmem:[#allocation8 + $0x428] sm:$0xff]
    %v344 = vld [vmem:[#allocation8 + $0x430] sm:$0xff]
    %v345 = vld [vmem:[#allocation8 + $0x438] sm:$0xff]
    %v346 = vld [vmem:[#allocation8 + $0x440] sm:$0xff]
    %v347 = vld [vmem:[#allocation8 + $0x448] sm:$0xff]
    %v348 = vld [vmem:[#allocation8 + $0x450] sm:$0xff]
    %v349 = vld [vmem:[#allocation8 + $0x458] sm:$0xff]
    %v350 = vld [vmem:[#allocation8 + $0x460] sm:$0xff]
    %v351 = vld [vmem:[#allocation8 + $0x468] sm:$0xff]
    %v352 = vld [vmem:[#allocation8 + $0x470] sm:$0xff]
    %v353 = vld [vmem:[#allocation8 + $0x478] sm:$0xff]
    %v354 = vld [vmem:[#allocation10] sm:$0x7]
    %v356 = vperm.slane %v354, 0
    %v357 = vperm.slane %v354, 1
    %v358 = vperm.slane %v354, 2
    %362 = vmatpush.msra.mxu0 %v255
    %363 = vmatpush.msra.mxu0 %v252
    %364 = vmatpush.msra.mxu0 %v249
    %365 = vmatpush.msra.mxu0 %v246
    %366 = vmatpush.msra.mxu0 %v243
    %367 = vmatpush.msra.mxu0 %v240
    %368 = vmatpush.msra.mxu0 %v237
    %369 = vmatpush.msra.mxu0 %v234
    %370 = vmatpush.msra.mxu0 %v231
    %371 = vmatpush.msra.mxu0 %v228
    %372 = vmatpush.msra.mxu0 %v225
    %373 = vmatpush.msra.mxu0 %v222
    %374 = vmatpush.msra.mxu0 %v219
    %375 = vmatpush.msra.mxu0 %v216
    %376 = vmatpush.msra.mxu0 %v213
    %377 = vmatpush.msra.mxu0 %v210
    %378 = vmatmul.f32.gmra.mxu0 %v207
    %v379 = vpop.f32.mrf.mxu0
    %v380 = vadd.f32 %v356, %v379
    %381 = vdwg.mxu0
    %382 = vmatpush.msra.mxu0 %v303
    %383 = vmatpush.msra.mxu0 %v300
    %384 = vmatpush.msra.mxu0 %v297
    %385 = vmatpush.msra.mxu0 %v294
    %386 = vmatpush.msra.mxu0 %v291
    %387 = vmatpush.msra.mxu0 %v288
    %388 = vmatpush.msra.mxu0 %v285
    %389 = vmatpush.msra.mxu0 %v282
    %390 = vmatpush.msra.mxu0 %v279
    %391 = vmatpush.msra.mxu0 %v276
    %392 = vmatpush.msra.mxu0 %v273
    %393 = vmatpush.msra.mxu0 %v270
    %394 = vmatpush.msra.mxu0 %v267
    %395 = vmatpush.msra.mxu0 %v264
    %396 = vmatpush.msra.mxu0 %v261
    %397 = vmatpush.msra.mxu0 %v258
    %398 = vmatmul.f32.gmra.mxu0 %v208
    %v399 = vpop.f32.mrf.mxu0
    %v400 = vadd.f32 %v380, %v399
    %401 = vdwg.mxu0
    %402 = vmatpush.msra.mxu0 %v351
    %403 = vmatpush.msra.mxu0 %v348
    %404 = vmatpush.msra.mxu0 %v345
    %405 = vmatpush.msra.mxu0 %v342
    %406 = vmatpush.msra.mxu0 %v339
    %407 = vmatpush.msra.mxu0 %v336
    %408 = vmatpush.msra.mxu0 %v333
    %409 = vmatpush.msra.mxu0 %v330
    %410 = vmatpush.msra.mxu0 %v327
    %411 = vmatpush.msra.mxu0 %v324
    %412 = vmatpush.msra.mxu0 %v321
    %413 = vmatpush.msra.mxu0 %v318
    %414 = vmatpush.msra.mxu0 %v315
    %415 = vmatpush.msra.mxu0 %v312
    %416 = vmatpush.msra.mxu0 %v309
    %417 = vmatpush.msra.mxu0 %v306
    %418 = vmatmul.f32.gmra.mxu0 %v209
    %v419 = vpop.f32.mrf.mxu0
    %v420 = vadd.f32 %v400, %v419
    %421 = vdwg.mxu0
    %422 = vmatpush.msra.mxu0 %v256
    %423 = vmatpush.msra.mxu0 %v253
    %424 = vmatpush.msra.mxu0 %v250
    %425 = vmatpush.msra.mxu0 %v247
    %426 = vmatpush.msra.mxu0 %v244
    %427 = vmatpush.msra.mxu0 %v241
    %428 = vmatpush.msra.mxu0 %v238
    %429 = vmatpush.msra.mxu0 %v235
    %430 = vmatpush.msra.mxu0 %v232
    %431 = vmatpush.msra.mxu0 %v229
    %432 = vmatpush.msra.mxu0 %v226
    %433 = vmatpush.msra.mxu0 %v223
    %434 = vmatpush.msra.mxu0 %v220
    %435 = vmatpush.msra.mxu0 %v217
    %436 = vmatpush.msra.mxu0 %v214
    %437 = vmatpush.msra.mxu0 %v211
    %438 = vmatmul.f32.gmra.mxu0 %v207
    %v439 = vpop.f32.mrf.mxu0
    %v440 = vadd.f32 %v357, %v439
    %441 = vdwg.mxu0
    %442 = vmatpush.msra.mxu0 %v304
    %443 = vmatpush.msra.mxu0 %v301
    %444 = vmatpush.msra.mxu0 %v298
    %445 = vmatpush.msra.mxu0 %v295
    %446 = vmatpush.msra.mxu0 %v292
    %447 = vmatpush.msra.mxu0 %v289
    %448 = vmatpush.msra.mxu0 %v286
    %449 = vmatpush.msra.mxu0 %v283
    %450 = vmatpush.msra.mxu0 %v280
    %451 = vmatpush.msra.mxu0 %v277
    %452 = vmatpush.msra.mxu0 %v274
    %453 = vmatpush.msra.mxu0 %v271
    %454 = vmatpush.msra.mxu0 %v268
    %455 = vmatpush.msra.mxu0 %v265
    %456 = vmatpush.msra.mxu0 %v262
    %457 = vmatpush.msra.mxu0 %v259
    %458 = vmatmul.f32.gmra.mxu0 %v208
    %v459 = vpop.f32.mrf.mxu0
    %v460 = vadd.f32 %v440, %v459
    %461 = vdwg.mxu0
    %462 = vmatpush.msra.mxu0 %v352
    %463 = vmatpush.msra.mxu0 %v349
    %464 = vmatpush.msra.mxu0 %v346
    %465 = vmatpush.msra.mxu0 %v343
    %466 = vmatpush.msra.mxu0 %v340
    %467 = vmatpush.msra.mxu0 %v337
    %468 = vmatpush.msra.mxu0 %v334
    %469 = vmatpush.msra.mxu0 %v331
    %470 = vmatpush.msra.mxu0 %v328
    %471 = vmatpush.msra.mxu0 %v325
    %472 = vmatpush.msra.mxu0 %v322
    %473 = vmatpush.msra.mxu0 %v319
    %474 = vmatpush.msra.mxu0 %v316
    %475 = vmatpush.msra.mxu0 %v313
    %476 = vmatpush.msra.mxu0 %v310
    %477 = vmatpush.msra.mxu0 %v307
    %478 = vmatmul.f32.gmra.mxu0 %v209
    %v479 = vpop.f32.mrf.mxu0
    %v480 = vadd.f32 %v460, %v479
    %481 = vdwg.mxu0
    %482 = vmatpush.msra.mxu0 %v257
    %483 = vmatpush.msra.mxu0 %v254
    %484 = vmatpush.msra.mxu0 %v251
    %485 = vmatpush.msra.mxu0 %v248
    %486 = vmatpush.msra.mxu0 %v245
    %487 = vmatpush.msra.mxu0 %v242
    %488 = vmatpush.msra.mxu0 %v239
    %489 = vmatpush.msra.mxu0 %v236
    %490 = vmatpush.msra.mxu0 %v233
    %491 = vmatpush.msra.mxu0 %v230
    %492 = vmatpush.msra.mxu0 %v227
    %493 = vmatpush.msra.mxu0 %v224
    %494 = vmatpush.msra.mxu0 %v221
    %495 = vmatpush.msra.mxu0 %v218
    %496 = vmatpush.msra.mxu0 %v215
    %497 = vmatpush.msra.mxu0 %v212
    %498 = vmatmul.f32.gmra.mxu0 %v207
    %v499 = vpop.f32.mrf.mxu0
    %v500 = vadd.f32 %v358, %v499
    %501 = vdwg.mxu0
    %502 = vmatpush.msra.mxu0 %v305
    %503 = vmatpush.msra.mxu0 %v302
    %504 = vmatpush.msra.mxu0 %v299
    %505 = vmatpush.msra.mxu0 %v296
    %506 = vmatpush.msra.mxu0 %v293
    %507 = vmatpush.msra.mxu0 %v290
    %508 = vmatpush.msra.mxu0 %v287
    %509 = vmatpush.msra.mxu0 %v284
    %510 = vmatpush.msra.mxu0 %v281
    %511 = vmatpush.msra.mxu0 %v278
    %512 = vmatpush.msra.mxu0 %v275
    %513 = vmatpush.msra.mxu0 %v272
    %514 = vmatpush.msra.mxu0 %v269
    %515 = vmatpush.msra.mxu0 %v266
    %516 = vmatpush.msra.mxu0 %v263
    %517 = vmatpush.msra.mxu0 %v260
    %518 = vmatmul.f32.gmra.mxu0 %v208
    %v519 = vpop.f32.mrf.mxu0
    %v520 = vadd.f32 %v500, %v519
    %521 = vdwg.mxu0
    %522 = vmatpush.msra.mxu0 %v353
    %523 = vmatpush.msra.mxu0 %v350
    %524 = vmatpush.msra.mxu0 %v347
    %525 = vmatpush.msra.mxu0 %v344
    %526 = vmatpush.msra.mxu0 %v341
    %527 = vmatpush.msra.mxu0 %v338
    %528 = vmatpush.msra.mxu0 %v335
    %529 = vmatpush.msra.mxu0 %v332
    %530 = vmatpush.msra.mxu0 %v329
    %531 = vmatpush.msra.mxu0 %v326
    %532 = vmatpush.msra.mxu0 %v323
    %533 = vmatpush.msra.mxu0 %v320
    %534 = vmatpush.msra.mxu0 %v317
    %535 = vmatpush.msra.mxu0 %v314
    %536 = vmatpush.msra.mxu0 %v311
    %537 = vmatpush.msra.mxu0 %v308
    %538 = vmatmul.f32.gmra.mxu0 %v209
    %v539 = vpop.f32.mrf.mxu0
    %v540 = vadd.f32 %v520, %v539
    %541 = vdwg.mxu0
    %v542 = vmul.f32 %v420, 0.01
    %v543 = vmul.f32 %v480, 0.01
    %v544 = vmul.f32 %v540, 0.01
    %v545 = vmax.f32 %v420, %v542
    %v546 = vmax.f32 %v480, %v543
    %v547 = vmax.f32 %v540, %v544
    %v548 = vld [vmem:[#allocation11] sm:$0xff]
    %v549 = vld [vmem:[#allocation11 + $0x8] sm:$0xff]
    %v550 = vld [vmem:[#allocation11 + $0x10] sm:$0xff]
    %v551 = vld [vmem:[#allocation11 + $0x18] sm:$0xff]
    %v552 = vld [vmem:[#allocation11 + $0x20] sm:$0xff]
    %v553 = vld [vmem:[#allocation11 + $0x28] sm:$0xff]
    %v554 = vld [vmem:[#allocation11 + $0x30] sm:$0xff]
    %v555 = vld [vmem:[#allocation11 + $0x38] sm:$0xff]
    %v556 = vld [vmem:[#allocation11 + $0x40] sm:$0xff]
    %v557 = vld [vmem:[#allocation11 + $0x48] sm:$0xff]
    %v558 = vld [vmem:[#allocation11 + $0x50] sm:$0xff]
    %v559 = vld [vmem:[#allocation11 + $0x58] sm:$0xff]
    %v560 = vld [vmem:[#allocation11 + $0x60] sm:$0xff]
    %v561 = vld [vmem:[#allocation11 + $0x68] sm:$0xff]
    %v562 = vld [vmem:[#allocation11 + $0x70] sm:$0xff]
    %v563 = vld [vmem:[#allocation11 + $0x78] sm:$0xff]
    %v564 = vld [vmem:[#allocation11 + $0x80] sm:$0xff]
    %v565 = vld [vmem:[#allocation11 + $0x88] sm:$0xff]
    %v566 = vld [vmem:[#allocation11 + $0x90] sm:$0xff]
    %v567 = vld [vmem:[#allocation11 + $0x98] sm:$0xff]
    %v568 = vld [vmem:[#allocation11 + $0xa0] sm:$0xff]
    %v569 = vld [vmem:[#allocation11 + $0xa8] sm:$0xff]
    %v570 = vld [vmem:[#allocation11 + $0xb0] sm:$0xff]
    %v571 = vld [vmem:[#allocation11 + $0xb8] sm:$0xff]
    %v572 = vld [vmem:[#allocation11 + $0xc0] sm:$0xff]
    %v573 = vld [vmem:[#allocation11 + $0xc8] sm:$0xff]
    %v574 = vld [vmem:[#allocation11 + $0xd0] sm:$0xff]
    %v575 = vld [vmem:[#allocation11 + $0xd8] sm:$0xff]
    %v576 = vld [vmem:[#allocation11 + $0xe0] sm:$0xff]
    %v577 = vld [vmem:[#allocation11 + $0xe8] sm:$0xff]
    %v578 = vld [vmem:[#allocation11 + $0xf0] sm:$0xff]
    %v579 = vld [vmem:[#allocation11 + $0xf8] sm:$0xff]
    %v580 = vld [vmem:[#allocation11 + $0x100] sm:$0xff]
    %v581 = vld [vmem:[#allocation11 + $0x108] sm:$0xff]
    %v582 = vld [vmem:[#allocation11 + $0x110] sm:$0xff]
    %v583 = vld [vmem:[#allocation11 + $0x118] sm:$0xff]
    %v584 = vld [vmem:[#allocation11 + $0x120] sm:$0xff]
    %v585 = vld [vmem:[#allocation11 + $0x128] sm:$0xff]
    %v586 = vld [vmem:[#allocation11 + $0x130] sm:$0xff]
    %v587 = vld [vmem:[#allocation11 + $0x138] sm:$0xff]
    %v588 = vld [vmem:[#allocation11 + $0x140] sm:$0xff]
    %v589 = vld [vmem:[#allocation11 + $0x148] sm:$0xff]
    %v590 = vld [vmem:[#allocation11 + $0x150] sm:$0xff]
    %v591 = vld [vmem:[#allocation11 + $0x158] sm:$0xff]
    %v592 = vld [vmem:[#allocation11 + $0x160] sm:$0xff]
    %v593 = vld [vmem:[#allocation11 + $0x168] sm:$0xff]
    %v594 = vld [vmem:[#allocation11 + $0x170] sm:$0xff]
    %v595 = vld [vmem:[#allocation11 + $0x178] sm:$0xff]
    %v596 = vld [vmem:[%s6] sm:$0x1]
    %v598 = vperm.slane %v596, 0
    %600 = vmatpush.msra.mxu0 %v563
    %601 = vmatpush.msra.mxu0 %v562
    %602 = vmatpush.msra.mxu0 %v561
    %603 = vmatpush.msra.mxu0 %v560
    %604 = vmatpush.msra.mxu0 %v559
    %605 = vmatpush.msra.mxu0 %v558
    %606 = vmatpush.msra.mxu0 %v557
    %607 = vmatpush.msra.mxu0 %v556
    %608 = vmatpush.msra.mxu0 %v555
    %609 = vmatpush.msra.mxu0 %v554
    %610 = vmatpush.msra.mxu0 %v553
    %611 = vmatpush.msra.mxu0 %v552
    %612 = vmatpush.msra.mxu0 %v551
    %613 = vmatpush.msra.mxu0 %v550
    %614 = vmatpush.msra.mxu0 %v549
    %615 = vmatpush.msra.mxu0 %v548
    %616 = vmatmul.f32.gmra.mxu0 %v545
    %v617 = vpop.f32.mrf.mxu0
    %v618 = vadd.f32 %v598, %v617
    %619 = vdwg.mxu0
    %620 = vmatpush.msra.mxu0 %v579
    %621 = vmatpush.msra.mxu0 %v578
    %622 = vmatpush.msra.mxu0 %v577
    %623 = vmatpush.msra.mxu0 %v576
    %624 = vmatpush.msra.mxu0 %v575
    %625 = vmatpush.msra.mxu0 %v574
    %626 = vmatpush.msra.mxu0 %v573
    %627 = vmatpush.msra.mxu0 %v572
    %628 = vmatpush.msra.mxu0 %v571
    %629 = vmatpush.msra.mxu0 %v570
    %630 = vmatpush.msra.mxu0 %v569
    %631 = vmatpush.msra.mxu0 %v568
    %632 = vmatpush.msra.mxu0 %v567
    %633 = vmatpush.msra.mxu0 %v566
    %634 = vmatpush.msra.mxu0 %v565
    %635 = vmatpush.msra.mxu0 %v564
    %636 = vmatmul.f32.gmra.mxu0 %v546
    %v637 = vpop.f32.mrf.mxu0
    %v638 = vadd.f32 %v618, %v637
    %639 = vdwg.mxu0
    %640 = vmatpush.msra.mxu0 %v595
    %641 = vmatpush.msra.mxu0 %v594
    %642 = vmatpush.msra.mxu0 %v593
    %643 = vmatpush.msra.mxu0 %v592
    %644 = vmatpush.msra.mxu0 %v591
    %645 = vmatpush.msra.mxu0 %v590
    %646 = vmatpush.msra.mxu0 %v589
    %647 = vmatpush.msra.mxu0 %v588
    %648 = vmatpush.msra.mxu0 %v587
    %649 = vmatpush.msra.mxu0 %v586
    %650 = vmatpush.msra.mxu0 %v585
    %651 = vmatpush.msra.mxu0 %v584
    %652 = vmatpush.msra.mxu0 %v583
    %653 = vmatpush.msra.mxu0 %v582
    %654 = vmatpush.msra.mxu0 %v581
    %655 = vmatpush.msra.mxu0 %v580
    %656 = vmatmul.f32.gmra.mxu0 %v547
    %v657 = vpop.f32.mrf.mxu0
    %v658 = vadd.f32 %v638, %v657
    %659 = vdwg.mxu0
    %660 = vst [vmem:[#allocation13] sm:$0xff] %v658
    // Predicated region
    $region54: #{improved_nn_forward.1} parent=1 // pred_check
      _
    $region55: #{improved_nn_forward.1} parent=1 // pred_check_branch
      %662 = sbr.rel (0) target = $region57
    $region56: #{improved_nn_forward.1} parent=1 // pred_region
      %664 = vsyncadd [#allocation4], 0
      %s666 = sshll.u32 [#allocation13], 4
      %s667 = int_to_ptr.vmem [resolvable:$true] %s666
      %s668 = sshll.u32 %s7, 4
      %s669 = int_to_ptr.hbm [resolvable:$true] %s668
      %671 = dma.vmem_to_hbm [thread:$0]  %s667, 128, %s669, [#allocation4]
    $region57: #{improved_nn_forward.1} parent=1 // pred_fallthru
      _
    // Predicated region
    $region58: #{improved_nn_forward.1} parent=1 // pred_check
      _
    $region59: #{improved_nn_forward.1} parent=1 // pred_check_branch
      %673 = sbr.rel (0) target = $region61
    $region60: #{improved_nn_forward.1} parent=1 // pred_region
      %675 = dma.done [#allocation4], 128
    $region61: #{improved_nn_forward.1} parent=1 // pred_fallthru
      _
    %676 = vsyncpa [#allocation3], 1
    %677 = vsyncpa [#allocation6], 1
    %678 = vsyncpa [#allocation9], 1
    %679 = vsyncpa [#allocation12], 1
    %680 = vsyncpa [#allocation4], 1

</llo_original>
